<compile_context>
chip_gen: v5e
topology: v5e:2x2
jax: 0.10.0
libtpu: 0.0.40
codegen_flags: <defaults>
</compile_context>

<pallas_src>
import jax
import jax.numpy as jnp
from jax.experimental import pallas as pl
from jax.experimental.pallas import tpu as pltpu


def _mish_kernel(x_ref, o_ref):
    x = x_ref[...].astype(jnp.float32)
    # mish(x) = x * tanh(softplus(x)); tanh(log1p(e^x)) = n / (n + 2) with
    # n = e^x * (e^x + 2).  Clamp the exp argument; passthrough branch used
    # for x > 20 (matches torch softplus threshold semantics).
    e = jnp.exp(jnp.minimum(x, 20.0))
    num = e * (e + 2.0)
    den = num + 2.0                      # >= 2, never zero
    r = pl.reciprocal(den, approx=True)  # EUP vrcp (cheap slot)
    r = r * (2.0 - den * r)              # one Newton step (VALU, free) -> ~f32 exact
    y = jnp.where(x > 20.0, x, x * num * r)
    o_ref[...] = y.astype(o_ref.dtype)


def _mish_jax(x):
    # plain-JAX path for tiny ragged tails
    x32 = x.astype(jnp.float32)
    return (x32 * jnp.tanh(jax.nn.softplus(x32))).astype(x.dtype)


def _select_tiling(itemsize):
    """Pick block bytes / vmem limit from the TPU generation (VMEM capacity)."""
    vmem_bytes = 128 << 20
    try:
        info = pltpu.get_tpu_info()
        vmem_bytes = int(getattr(info, "vmem_capacity_bytes", vmem_bytes))
    except Exception:
        pass
    if vmem_bytes <= (64 << 20):
        # v7x-class: 64 MiB VMEM / TC, 3.2 TB/s HBM -> bigger blocks to
        # amortize the ~0.35us per-step overhead; 6 MiB * 4 buffers = 24 MiB.
        block_bytes = 6 << 20
        vmem_limit = 44 << 20
    else:
        # v5e / v6e: 128 MiB VMEM; 4 MiB * 4 buffers = 16 MiB under a 32 MiB
        # limit (the limit bump matters on v5e's 16 MiB scoped default).
        block_bytes = 4 << 20
        vmem_limit = 32 << 20
    return block_bytes // itemsize, vmem_limit


def _mish_2d(x2d, rows, width, dtype):
    """Run the Pallas kernel on a lane-dense (rows, width) view."""
    itemsize = jnp.dtype(dtype).itemsize
    min_rows = {4: 8, 2: 16, 1: 32}.get(itemsize, 8)
    block_elems, vmem_limit = _select_tiling(itemsize)

    tr = max(block_elems // width, min_rows)
    tr = (tr // min_rows) * min_rows

    # Keep at least ~4 pipeline steps for arrays above ~2 MiB so block writes
    # overlap block reads (and v7x's 2 TCs can split the grid).
    total_bytes = rows * width * itemsize
    if total_bytes > (2 << 20):
        quarter = -(-rows // 4)                                   # ceil(rows/4)
        quarter = max((-(-quarter // min_rows)) * min_rows, min_rows)
        tr = min(tr, quarter)

    if tr >= rows:
        tr = rows                         # single block == full array (any shape OK)
    grid = (pl.cdiv(rows, tr),)           # ragged last row-block masked by Pallas

    return pl.pallas_call(
        _mish_kernel,
        out_shape=jax.ShapeDtypeStruct((rows, width), dtype),
        grid_spec=pltpu.PrefetchScalarGridSpec(
            num_scalar_prefetch=0,
            grid=grid,
            in_specs=[pl.BlockSpec((tr, width), lambda i: (i, 0))],
            out_specs=pl.BlockSpec((tr, width), lambda i: (i, 0)),
        ),
        compiler_params=pltpu.CompilerParams(
            dimension_semantics=("parallel",),
            vmem_limit_bytes=vmem_limit,
        ),
    )(x2d)


def mish(x: jax.Array) -> jax.Array:
    """Elementwise Mish on an arbitrary-shaped array via a Pallas TPU kernel."""
    orig_shape = x.shape
    n = x.size
    if n == 0:
        return x
    dtype = x.dtype

    # Widest lane-dense width that divides n -> no pad/slice round-trip
    # (NN activation sizes are almost always multiples of 128).
    width = 0
    for cand in (4096, 2048, 1024, 512, 256, 128):
        if n % cand == 0:
            width = cand
            break

    if width:
        rows = n // width
        out2d = _mish_2d(x.reshape(rows, width), rows, width, dtype)
        return out2d.reshape(orig_shape)

    # Ragged fallback: kernel on the 128-aligned prefix, plain JAX on the tail.
    flat = x.reshape(-1)
    aligned = (n // 128) * 128
    if aligned == 0:
        return _mish_jax(x)
    width = 128
    rows = aligned // width
    head_out = _mish_2d(flat[:aligned].reshape(rows, width), rows, width, dtype)
    tail_out = _mish_jax(flat[aligned:])
    return jnp.concatenate([head_out.reshape(-1), tail_out]).reshape(orig_shape)


def mish_ref(x):
    # pure-JAX reference
    return x * jnp.tanh(jax.nn.softplus(x))


if __name__ == "__main__":
    key = jax.random.PRNGKey(0)
    x = jax.random.normal(key, (2, 4, 16, 16), dtype=jnp.float32) * 3.0

    y = mish(x)
    jax.block_until_ready(y)

    y_ref = mish_ref(x)
    assert y.shape == x.shape and y.dtype == x.dtype
    assert jnp.allclose(y, y_ref, atol=1e-4, rtol=1e-4), "mismatch vs reference"

    # ragged-size path (n % 128 != 0): aligned-prefix kernel + JAX tail
    x2 = jax.random.normal(jax.random.PRNGKey(1), (5, 30), dtype=jnp.float32) * 3.0
    y2 = mish(x2)
    jax.block_until_ready(y2)
    assert jnp.allclose(y2, mish_ref(x2), atol=1e-4, rtol=1e-4), "ragged mismatch"

    print("KERNEL_OK")
</pallas_src>

<mosaic_0001>
module attributes {stable_mosaic.version = 11 : i64} {
  func.func @_mish_kernel(%arg0: i32, %arg1: memref<1x2048xf32, #tpu.memory_space<vmem>>, %arg2: memref<1x2048xf32, #tpu.memory_space<vmem>>) attributes {dimension_semantics = [#tpu.dimension_semantics<parallel>], iteration_bounds = array<i64: 1>, scalar_prefetch = 0 : i64, scratch_operands = 0 : i64, tpu.core_type = #tpu.core_type<tc>, window_params = [{transform_indices = @transform_0, window_bounds = array<i64: 1, 2048>}, {transform_indices = @transform_1, window_bounds = array<i64: 1, 2048>}]} {
    %c0 = arith.constant 0 : index
    %c0_0 = arith.constant 0 : index
    %0 = vector.load %arg1[%c0, %c0_0] : memref<1x2048xf32, #tpu.memory_space<vmem>>, vector<1x2048xf32>
    %cst = arith.constant 2.000000e+01 : f32
    %1 = vector.broadcast %cst : f32 to vector<1x2048xf32>
    %2 = arith.minimumf %0, %1 : vector<1x2048xf32>
    %3 = math.exp %2 : vector<1x2048xf32>
    %cst_1 = arith.constant 2.000000e+00 : f32
    %4 = vector.broadcast %cst_1 : f32 to vector<1x2048xf32>
    %5 = arith.addf %3, %4 : vector<1x2048xf32>
    %6 = arith.mulf %3, %5 : vector<1x2048xf32>
    %cst_2 = arith.constant 2.000000e+00 : f32
    %7 = vector.broadcast %cst_2 : f32 to vector<1x2048xf32>
    %8 = arith.addf %6, %7 : vector<1x2048xf32>
    %9 = tpu.reciprocal %8 {approx = true} : vector<1x2048xf32> -> vector<1x2048xf32>
    %10 = arith.mulf %8, %9 : vector<1x2048xf32>
    %cst_3 = arith.constant 2.000000e+00 : f32
    %11 = vector.broadcast %cst_3 : f32 to vector<1x2048xf32>
    %12 = arith.subf %11, %10 : vector<1x2048xf32>
    %13 = arith.mulf %9, %12 : vector<1x2048xf32>
    %cst_4 = arith.constant 2.000000e+01 : f32
    %14 = vector.broadcast %cst_4 : f32 to vector<1x2048xf32>
    %15 = arith.cmpf ogt, %0, %14 : vector<1x2048xf32>
    %16 = arith.mulf %0, %6 : vector<1x2048xf32>
    %17 = arith.mulf %16, %13 : vector<1x2048xf32>
    %18 = arith.select %15, %0, %17 : vector<1x2048xi1>, vector<1x2048xf32>
    %c0_5 = arith.constant 0 : index
    %c0_6 = arith.constant 0 : index
    %19 = vector.load %arg2[%c0_5, %c0_6] : memref<1x2048xf32, #tpu.memory_space<vmem>>, vector<1x2048xf32>
    tpu.vector_store %arg2[%c0_5, %c0_6], %18 {strides = array<i32>} : memref<1x2048xf32, #tpu.memory_space<vmem>>, vector<1x2048xf32>,
    return
  }
  func.func @transform_0(%arg0: i32) -> (i32, i32) {
    %c0_i32 = arith.constant 0 : i32
    %c0_i32_0 = arith.constant 0 : i32
    return %arg0, %c0_i32 : i32, i32
  }
  func.func @transform_1(%arg0: i32) -> (i32, i32) {
    %c0_i32 = arith.constant 0 : i32
    %c0_i32_0 = arith.constant 0 : i32
    return %arg0, %c0_i32 : i32, i32
  }
}

</mosaic_0001>

<llo_original>
// kernel: tpu_custom_call.1
$region0: #{tpu_custom_call.1}
  #allocation0 [shape = 'u32[]', space=smem, size = 0x4, offset = 0x4, fixed_abs, tag = 'smem constant byte address 0x4 - core index']
  #allocation1 [shape = 'u32[72,128]{1,0:T(1,128)}', space=vmem, size = 0x9000, scoped, tag = 'internal scratch']
  %s0 = inlined_call_operand.hbm [shape: f32[1,2048], index: 0, kind: input, shape index: {}]
  %s1 = inlined_call_operand.hbm [shape: f32[1,2048], index: 1, kind: output, shape index: {}]
  %s2 = sld [smem:[#allocation0]]
  $region18: #{tpu_custom_call.1} parent=0
    _
  %s4 = ssub.s32 1, %s2
  %s5 = scalar_select 0, %s4, %s2
  $region1: #{tpu_custom_call.1} parent=0
    #allocation2 [shape = 'u8[8192]{0}', space=vmem, size = 0x2000, scoped, tag = 'input window, operand 0, single buffered']
    #allocation3 [shape = 's32[1]{0}', space=sflag, size = 0x4, scoped, tag = 'scoped memory for tpu_custom_call.1']
    #allocation4 [shape = 's32[1]{0}', space=sflag, size = 0x4, scoped, tag = 'scoped memory for tpu_custom_call.1']
    #allocation5 [shape = 'u8[8192]{0}', space=vmem, size = 0x2000, scoped, tag = 'output window, operand 0, single buffered']
    %6 = vsyncpa [#allocation3], 0
    %7 = vsyncpa [#allocation4], 0
    // Predicated region
    $region2: #{tpu_custom_call.1} parent=1 // pred_check
      _
    $region3: #{tpu_custom_call.1} parent=1 // pred_check_branch
      %9 = sbr.rel (0) target = $region5
    $region4: #{tpu_custom_call.1} parent=1 // pred_region
      %11 = vsyncadd [#allocation3], 0
      %s13 = sshll.u32 %s0, 4
      %s14 = int_to_ptr.hbm [resolvable:$true] %s13
      %s15 = sshll.u32 [#allocation2], 4
      %s16 = int_to_ptr.vmem [resolvable:$true] %s15
      %18 = dma.hbm_to_vmem [thread:$0]  %s14, 256, %s16, [#allocation3]
    $region5: #{tpu_custom_call.1} parent=1 // pred_fallthru
      _
    // Predicated region
    $region6: #{tpu_custom_call.1} parent=1 // pred_check
      _
    $region7: #{tpu_custom_call.1} parent=1 // pred_check_branch
      %20 = sbr.rel (0) target = $region9
    $region8: #{tpu_custom_call.1} parent=1 // pred_region
      %22 = dma.done [#allocation3], 256
    $region9: #{tpu_custom_call.1} parent=1 // pred_fallthru
      _
    %v23 = vld [vmem:[#allocation2] sm:$0xff]
    %v24 = vld [vmem:[#allocation2 + $0x8] sm:$0xff]
    %v25 = vmin.f32 %v23, 20.0
    %v26 = vmin.f32 %v24, 20.0
    %v27 = vmul.f32 %v25, 1.442695
    %v28 = vpow.pop %v27
    %v29 = vmul.f32 %v26, 1.442695
    %v30 = vpow.pop %v29
    %v31 = vadd.f32 %v28, 2.0
    %v32 = vadd.f32 %v30, 2.0
    %v33 = vmul.f32 %v28, %v31
    %v34 = vmul.f32 %v30, %v32
    %v35 = vadd.f32 %v33, 2.0
    %v36 = vadd.f32 %v34, 2.0
    %v37 = vrcp.pop %v35
    %v38 = vrcp.pop %v36
    %v39 = vmul.f32 %v35, %v37
    %v40 = vmul.f32 %v36, %v38
    %v41 = vsub.f32 2.0, %v39
    %v42 = vsub.f32 2.0, %v40
    %v43 = vmul.f32 %v37, %v41
    %v44 = vmul.f32 %v38, %v42
    %vm45 = vcmp.gt.f32.partialorder %v23, 20.0
    %vm46 = vcmp.gt.f32.partialorder %v24, 20.0
    %v47 = vmul.f32 %v23, %v33
    %v48 = vmul.f32 %v24, %v34
    %v49 = vmul.f32 %v47, %v43
    %v50 = vmul.f32 %v48, %v44
    %v51 = vsel %vm45, %v23, %v49
    %v52 = vsel %vm46, %v24, %v50
    %53 = vst [vmem:[#allocation5] sm:$0xff] %v51
    %54 = vst [vmem:[#allocation5 + $0x8] sm:$0xff] %v52
    // Predicated region
    $region10: #{tpu_custom_call.1} parent=1 // pred_check
      _
    $region11: #{tpu_custom_call.1} parent=1 // pred_check_branch
      %56 = sbr.rel (0) target = $region13
    $region12: #{tpu_custom_call.1} parent=1 // pred_region
      %58 = vsyncadd [#allocation4], 0
      %s60 = sshll.u32 [#allocation5], 4
      %s61 = int_to_ptr.vmem [resolvable:$true] %s60
      %s62 = sshll.u32 %s1, 4
      %s63 = int_to_ptr.hbm [resolvable:$true] %s62
      %65 = dma.vmem_to_hbm [thread:$0]  %s61, 256, %s63, [#allocation4]
    $region13: #{tpu_custom_call.1} parent=1 // pred_fallthru
      _
    // Predicated region
    $region14: #{tpu_custom_call.1} parent=1 // pred_check
      _
    $region15: #{tpu_custom_call.1} parent=1 // pred_check_branch
      %67 = sbr.rel (0) target = $region17
    $region16: #{tpu_custom_call.1} parent=1 // pred_region
      %69 = dma.done [#allocation4], 256
    $region17: #{tpu_custom_call.1} parent=1 // pred_fallthru
      _
    %70 = vsyncpa [#allocation3], 1
    %71 = vsyncpa [#allocation4], 1

</llo_original>
